<compile_context>
chip_gen: v7x
topology: tpu7x:2x2x1
jax: 0.10.0
libtpu: 0.0.40
codegen_flags: <defaults>
</compile_context>

<pallas_src>
import jax
import jax.numpy as jnp
from jax.experimental import pallas as pl
from jax.experimental.pallas import tpu as pltpu


def _copy_kernel(x_ref, o_ref):
    # Identity copy of the current (row_tile, pixels) block -- the module has no
    # arithmetic, so the kernel only streams the (already reshaped) data through.
    o_ref[...] = x_ref[...]


# Sublane quantum per element size (f32 -> 8, bf16 -> 16, int8/fp8 -> 32).
_SUBLANE_QUANTUM = {1: 32, 2: 16, 4: 8, 8: 8}

# ~2 MiB per block: contiguous slabs big enough for ~85%+ of HBM roofline, small
# enough that 2 (double-buffer) x 2 (in+out) blocks fit every generation's scoped
# VMEM budget (incl. v7x's 64 MiB physical / 32 MiB scoped).
_TARGET_BLOCK_BYTES = 2 * 1024 * 1024


def reshape_forward(x, pixels, *, use_pallas=True):
    """Pallas equivalent of `x.view(-1, pixels)` for a contiguous NCHW input."""
    total = x.size
    assert total % pixels == 0, "total element count must be divisible by pixels"
    rows = total // pixels

    # Row-major flatten (== torch.view on a contiguous tensor). Pure metadata; XLA
    # lowers this to a bitcast -- zero bytes of HBM traffic.
    x_flat = jnp.reshape(x, (rows, pixels))
    if not use_pallas:
        return x_flat

    itemsize = jnp.dtype(x.dtype).itemsize
    quantum = _SUBLANE_QUANTUM.get(itemsize, 8)
    total_bytes = total * itemsize
    row_bytes = pixels * itemsize

    small = total_bytes <= _TARGET_BLOCK_BYTES
    lane_aligned = (pixels % 128) == 0

    if small or rows <= quantum:
        # Tiny input: one full block, grid=(1,). Block shape equals the full array
        # dims, which waives the (8,128) divisibility constraint; avoids per-step
        # overhead for small tensors.
        row_tile = rows
        grid = (1,)
    elif not lane_aligned:
        # Large but not 128-lane-aligned: a masked-store copy kernel would be pure
        # overhead; the metadata reshape above is already the correct (and fastest)
        # result, so skip the kernel entirely.
        return x_flat
    else:
        # Contiguous row-tiled, full-width blocks of ~_TARGET_BLOCK_BYTES.
        row_tile = max(quantum, (_TARGET_BLOCK_BYTES // row_bytes) // quantum * quantum)
        row_tile = min(row_tile, (rows // quantum) * quantum)
        grid = (pl.cdiv(rows, row_tile),)

    out = pl.pallas_call(
        _copy_kernel,
        out_shape=jax.ShapeDtypeStruct((rows, pixels), x.dtype),
        grid_spec=pltpu.PrefetchScalarGridSpec(
            num_scalar_prefetch=0,
            grid=grid,
            in_specs=[pl.BlockSpec((row_tile, pixels), lambda i: (i, 0))],
            out_specs=pl.BlockSpec((row_tile, pixels), lambda i: (i, 0)),
        ),
        # Output aliases the (flattened) input buffer: no second HBM allocation /
        # writeback target is materialized.
        input_output_aliases={0: 0},
        compiler_params=pltpu.CompilerParams(
            # Row-tile axis is the parallel axis -> shards across both v7x TCs.
            dimension_semantics=("parallel",),
        ),
    )(x_flat)
    return out


if __name__ == "__main__":
    # Small NCHW input consistent with typical usage of this module
    # (flatten images before an MLP): pixels = C * H * W.
    B, C, H, W = 2, 4, 16, 16
    pixels = C * H * W  # 1024

    key = jax.random.PRNGKey(0)
    x = jax.random.normal(key, (B, C, H, W), dtype=jnp.float32)

    # Reference (== torch .view on contiguous input), computed up front.
    ref = jnp.reshape(x, (-1, pixels))

    fwd = jax.jit(lambda a: reshape_forward(a, pixels))
    y = jax.block_until_ready(fwd(x))

    assert y.shape == (B, pixels)
    assert y.dtype == x.dtype
    assert bool(jnp.array_equal(y, ref))

    print("KERNEL_OK")
</pallas_src>

<mosaic_0001>
module attributes {stable_mosaic.version = 11 : i64} {
  func.func @_copy_kernel(%arg0: i32, %arg1: memref<2x1024xf32, #tpu.memory_space<vmem>>, %arg2: memref<2x1024xf32, #tpu.memory_space<vmem>>) attributes {dimension_semantics = [#tpu.dimension_semantics<parallel>], iteration_bounds = array<i64: 1>, scalar_prefetch = 0 : i64, scratch_operands = 0 : i64, tpu.core_type = #tpu.core_type<tc>, window_params = [{transform_indices = @transform_0, window_bounds = array<i64: 2, 1024>}, {transform_indices = @transform_1, window_bounds = array<i64: 2, 1024>}]} {
    %c0 = arith.constant 0 : index
    %c0_0 = arith.constant 0 : index
    %0 = vector.load %arg1[%c0, %c0_0] : memref<2x1024xf32, #tpu.memory_space<vmem>>, vector<2x1024xf32>
    %c0_1 = arith.constant 0 : index
    %c0_2 = arith.constant 0 : index
    %1 = vector.load %arg2[%c0_1, %c0_2] : memref<2x1024xf32, #tpu.memory_space<vmem>>, vector<2x1024xf32>
    tpu.vector_store %arg2[%c0_1, %c0_2], %0 {strides = array<i32>} : memref<2x1024xf32, #tpu.memory_space<vmem>>, vector<2x1024xf32>,
    return
  }
  func.func @transform_0(%arg0: i32) -> (i32, i32) {
    %c0_i32 = arith.constant 0 : i32
    %c0_i32_0 = arith.constant 0 : i32
    return %arg0, %c0_i32 : i32, i32
  }
  func.func @transform_1(%arg0: i32) -> (i32, i32) {
    %c0_i32 = arith.constant 0 : i32
    %c0_i32_0 = arith.constant 0 : i32
    return %arg0, %c0_i32 : i32, i32
  }
}

</mosaic_0001>

<llo_original>
// kernel: _lambda_.1
$region0: #{_lambda_.1}
  #allocation0 [shape = 'u32[]', space=smem, size = 0x4, offset = 0x4, fixed_abs, tag = 'smem constant byte address 0x4 - core index']
  #allocation1 [shape = 'u32[144,128]{1,0:T(1,128)}', space=vmem, size = 0x12000, scoped, tag = 'internal scratch']
  %s0 = inlined_call_operand.hbm [shape: f32[2,1024], index: 0, kind: input, shape index: {}, may-alias: {0,1}]
  %s1 = inlined_call_operand.hbm [shape: f32[2,1024], index: 1, kind: output, shape index: {}, may-alias: {0,1}]
  %s2 = sld [smem:[#allocation0]]
  $region18: #{_lambda_.1} parent=0
    _
  %s4 = ssub.s32 1, %s2
  %s5 = scalar_select 0, %s4, %s2
  $region1: #{_lambda_.1} parent=0
    #allocation2 [shape = 'u8[8192]{0}', space=vmem, size = 0x2000, scoped, tag = 'input window, operand 0, single buffered']
    #allocation3 [shape = 's32[1]{0}', space=sflag, size = 0x4, scoped, tag = 'scoped memory for _lambda_.1']
    #allocation4 [shape = 's32[1]{0}', space=sflag, size = 0x4, scoped, tag = 'scoped memory for _lambda_.1']
    #allocation5 [shape = 'u8[8192]{0}', space=vmem, size = 0x2000, scoped, tag = 'output window, operand 0, single buffered']
    %6 = vsyncpa [#allocation3], 0
    %7 = vsyncpa [#allocation4], 0
    // Predicated region
    $region2: #{_lambda_.1} parent=1 // pred_check
      _
    $region3: #{_lambda_.1} parent=1 // pred_check_branch
      %9 = sbr.rel (0) target = $region5
    $region4: #{_lambda_.1} parent=1 // pred_region
      %s11 = ssub.s32 256, 256
      %12 = vsyncadd [#allocation3], %s11
      %s14 = sshll.u32 [#allocation2], 4
      %s15 = int_to_ptr.vmem [resolvable:$true] %s14
      %17 = dma.hbm_to_vmem [thread:$0]  %s0, 256, %s15, [#allocation3]
    $region5: #{_lambda_.1} parent=1 // pred_fallthru
      _
    // Predicated region
    $region6: #{_lambda_.1} parent=1 // pred_check
      _
    $region7: #{_lambda_.1} parent=1 // pred_check_branch
      %19 = sbr.rel (0) target = $region9
    $region8: #{_lambda_.1} parent=1 // pred_region
      %20 = dma.done [#allocation3], 256
    $region9: #{_lambda_.1} parent=1 // pred_fallthru
      _
    %v21 = vld [vmem:[#allocation2] sm:$0xff]
    %v22 = vld [vmem:[#allocation2 + $0x8] sm:$0xff]
    %23 = vst [vmem:[#allocation5] sm:$0xff] %v21
    %24 = vst [vmem:[#allocation5 + $0x8] sm:$0xff] %v22
    // Predicated region
    $region10: #{_lambda_.1} parent=1 // pred_check
      _
    $region11: #{_lambda_.1} parent=1 // pred_check_branch
      %26 = sbr.rel (0) target = $region13
    $region12: #{_lambda_.1} parent=1 // pred_region
      %s28 = ssub.s32 256, 256
      %29 = vsyncadd [#allocation4], %s28
      %s31 = sshll.u32 [#allocation5], 4
      %s32 = int_to_ptr.vmem [resolvable:$true] %s31
      %34 = dma.vmem_to_hbm [thread:$0]  %s32, 256, %s1, [#allocation4]
    $region13: #{_lambda_.1} parent=1 // pred_fallthru
      _
    // Predicated region
    $region14: #{_lambda_.1} parent=1 // pred_check
      _
    $region15: #{_lambda_.1} parent=1 // pred_check_branch
      %36 = sbr.rel (0) target = $region17
    $region16: #{_lambda_.1} parent=1 // pred_region
      %37 = dma.done [#allocation4], 256
    $region17: #{_lambda_.1} parent=1 // pred_fallthru
      _
    %38 = vsyncpa [#allocation3], 1
    %39 = vsyncpa [#allocation4], 1

</llo_original>
